<compile_context>
chip_gen: v5e
topology: v5e:2x2
jax: 0.10.0
libtpu: 0.0.40
codegen_flags: <defaults>
</compile_context>

<pallas_src>
import functools

import jax
import jax.numpy as jnp
from jax import lax
from jax.experimental import pallas as pl
from jax.experimental.pallas import tpu as pltpu


LANE = 128


def _round_up(x, m):
    return ((x + m - 1) // m) * m


# ----------------------------------------------------------------------------
# Kernel: fused 2-matmul MLP -> (lane-dense probs slab, f32 value column).
# ----------------------------------------------------------------------------
def _actor_critic_kernel(x_ref, wf1_ref, bf1_ref, wf2_ref, bf2_ref,
                         probs_ref, value_ref, *, action_dim):
    x = x_ref[...]                                                # [tb, S] f32

    # Fused layer 1 (action + value hidden in one padded matmul) + tanh.
    h = jnp.tanh(
        jnp.dot(x, wf1_ref[...], preferred_element_type=jnp.float32)
        + bf1_ref[...])                                           # [tb, Hp]

    # Fused layer 2 (block-diagonal): lanes 0..A-1 = logits, lane A = value, rest 0.
    z = (jnp.dot(h, wf2_ref[...], preferred_element_type=jnp.float32)
         + bf2_ref[...])                                          # [tb, Op]

    col = lax.broadcasted_iota(jnp.int32, z.shape, dimension=1)
    is_action = col < action_dim

    # Masked, numerically-stable softmax over the action lanes only.
    zl = jnp.where(is_action, z, -jnp.inf)
    m = jnp.max(zl, axis=-1, keepdims=True)
    e = jnp.exp(zl - m)                                           # 0 outside action lanes
    denom = jnp.sum(e, axis=-1, keepdims=True)
    probs = e / denom                                             # exact divide (correctness)

    # Lane-dense probability slab (unmasked full-width stores); value in its own
    # tiny f32 output so it keeps full precision even when the slab is bf16.
    probs_ref[...] = probs.astype(probs_ref.dtype)
    value = jnp.sum(jnp.where(col == action_dim, z, 0.0), axis=-1, keepdims=True)
    value_ref[...] = value.astype(value_ref.dtype)


# ----------------------------------------------------------------------------
# Host-side, one-time parameter fusion + lane padding.
# ----------------------------------------------------------------------------
def fuse_params(params):
    """(w1,b1,w2,b2,v1,c1,v2,c2) -> ((wf1,bf1,wf2,bf2), action_dim, n_latent)."""
    w1, b1, w2, b2, v1, c1, v2, c2 = params
    state_dim, n_latent = w1.shape
    action_dim = w2.shape[1]

    h_pad = _round_up(2 * n_latent, LANE)          # fused hidden width (>=128)
    o_pad = _round_up(action_dim + 1, LANE)        # fused output width  (>=128)

    wf1 = jnp.zeros((state_dim, h_pad), jnp.float32)
    wf1 = wf1.at[:, :n_latent].set(w1)
    wf1 = wf1.at[:, n_latent:2 * n_latent].set(v1)

    bf1 = jnp.zeros((1, h_pad), jnp.float32)
    bf1 = bf1.at[:, :n_latent].set(b1)
    bf1 = bf1.at[:, n_latent:2 * n_latent].set(c1)

    wf2 = jnp.zeros((h_pad, o_pad), jnp.float32)
    wf2 = wf2.at[:n_latent, :action_dim].set(w2)
    wf2 = wf2.at[n_latent:2 * n_latent, action_dim:action_dim + 1].set(v2)

    bf2 = jnp.zeros((1, o_pad), jnp.float32)
    bf2 = bf2.at[:, :action_dim].set(b2)
    bf2 = bf2.at[:, action_dim:action_dim + 1].set(c2)

    return (wf1, bf1, wf2, bf2), action_dim, n_latent


def _choose_tiling(B, target=4096, min_grid=2):
    """Pick the batch tile first, then pad B up to a multiple of it.

    - tile_b is sublane-aligned (multiple of 8) and capped at `target`
      (target=4096 keeps double-buffered in+out tiles under v5e's 16 MiB
      scoped-VMEM default and v7x's 64 MiB-per-TC VMEM).
    - when the batch allows it, force >= `min_grid` steps so the "parallel"
      grid axis can shard across v7x's two TensorCores.
    """
    b_min = _round_up(max(B, 1), 8)
    if b_min <= 8:
        return 8, 8
    steps = max(min_grid, -(-b_min // target))       # ceil(b_min / target), >= min_grid
    tile_b = _round_up(-(-b_min // steps), 8)        # ceil(b_min / steps), sublane-aligned
    b_pad = tile_b * steps
    return tile_b, b_pad


# ----------------------------------------------------------------------------
# Wrapper.
# ----------------------------------------------------------------------------
def actor_critic_forward(state, fused_params, action_dim, *,
                         probs_dtype=jnp.bfloat16, tile_target=4096):
    """state: [B, state_dim] f32.  Returns (action_probs [B, A], state_value [B, 1])."""
    wf1, bf1, wf2, bf2 = fused_params
    B, state_dim = state.shape
    h_pad = wf1.shape[1]
    o_pad = wf2.shape[1]

    tile_b, b_pad = _choose_tiling(B, target=tile_target)
    if b_pad != B:
        state = jnp.pad(state, ((0, b_pad - B), (0, 0)))   # padded rows sliced off below
    grid = (b_pad // tile_b,)

    probs_bytes = jnp.dtype(probs_dtype).itemsize
    cost = pl.CostEstimate(
        flops=2 * b_pad * (state_dim * h_pad + h_pad * o_pad),
        transcendentals=b_pad * (h_pad + o_pad),
        bytes_accessed=(4 * (b_pad * state_dim + state_dim * h_pad + h_pad
                             + h_pad * o_pad + o_pad + b_pad)
                        + probs_bytes * b_pad * o_pad),
    )

    probs_slab, value = pl.pallas_call(
        functools.partial(_actor_critic_kernel, action_dim=action_dim),
        out_shape=(jax.ShapeDtypeStruct((b_pad, o_pad), probs_dtype),
                   jax.ShapeDtypeStruct((b_pad, 1), jnp.float32)),
        grid=grid,
        in_specs=[
            pl.BlockSpec((tile_b, state_dim), lambda i: (i, 0)),
            pl.BlockSpec((state_dim, h_pad), lambda i: (0, 0)),   # weights: constant maps,
            pl.BlockSpec((1, h_pad), lambda i: (0, 0)),           # stay VMEM-resident
            pl.BlockSpec((h_pad, o_pad), lambda i: (0, 0)),
            pl.BlockSpec((1, o_pad), lambda i: (0, 0)),
        ],
        out_specs=(pl.BlockSpec((tile_b, o_pad), lambda i: (i, 0)),
                   pl.BlockSpec((tile_b, 1), lambda i: (i, 0))),
        compiler_params=pltpu.CompilerParams(
            dimension_semantics=("parallel",)),   # batch axis shards across v7x's 2 TCs
        cost_estimate=cost,
    )(state, wf1, bf1, wf2, bf2)

    probs = probs_slab[:B, :action_dim]
    state_value = value[:B]
    return probs, state_value


# ----------------------------------------------------------------------------
# Parameter init (PyTorch default-init-like uniform ranges), unfused layout.
# ----------------------------------------------------------------------------
def init_params(key, state_dim, action_dim, n_latent_var):
    ks = jax.random.split(key, 8)

    def lin(kw, kb, fan_in, fan_out):
        bound = 1.0 / jnp.sqrt(fan_in)
        w = jax.random.uniform(kw, (fan_in, fan_out), jnp.float32, -bound, bound)
        b = jax.random.uniform(kb, (1, fan_out), jnp.float32, -bound, bound)
        return w, b

    w1, b1 = lin(ks[0], ks[1], state_dim, n_latent_var)     # action_layer[0]
    w2, b2 = lin(ks[2], ks[3], n_latent_var, action_dim)    # action_layer[2]
    v1, c1 = lin(ks[4], ks[5], state_dim, n_latent_var)     # value_layer[0]
    v2, c2 = lin(ks[6], ks[7], n_latent_var, 1)             # value_layer[2]
    return (w1, b1, w2, b2, v1, c1, v2, c2)


def _reference(state, params):
    """Pure-JAX reference (unfused math, highest matmul precision)."""
    w1, b1, w2, b2, v1, c1, v2, c2 = params
    hi = lax.Precision.HIGHEST
    h = jnp.tanh(jnp.dot(state, w1, precision=hi) + b1)
    probs = jax.nn.softmax(jnp.dot(h, w2, precision=hi) + b2, axis=-1)
    g = jnp.tanh(jnp.dot(state, v1, precision=hi) + c1)
    value = jnp.dot(g, v2, precision=hi) + c2
    return probs, value


if __name__ == "__main__":
    key = jax.random.PRNGKey(0)
    k_state, k_state2, k_params = jax.random.split(key, 3)

    state_dim, action_dim, n_latent_var = 16, 8, 32
    params = init_params(k_params, state_dim, action_dim, n_latent_var)
    fused, a_dim, _ = fuse_params(params)            # one-time host-side fusion

    # --- Case 1: tiny RL-style batch (single grid step). bf16 probs slab. -------
    state = jax.random.normal(k_state, (8, state_dim), jnp.float32)
    probs, value = actor_critic_forward(state, fused, a_dim)
    jax.block_until_ready((probs, value))
    ref_probs, ref_value = _reference(state, params)

    assert probs.shape == (8, action_dim) and value.shape == (8, 1)
    assert jnp.allclose(probs.astype(jnp.float32), ref_probs, atol=8e-3, rtol=8e-3)
    assert jnp.allclose(value, ref_value, atol=2e-3, rtol=2e-3)
    assert jnp.allclose(jnp.sum(probs.astype(jnp.float32), axis=-1), 1.0, atol=2e-2)

    # --- Case 2: awkward batch (exercises tile-first padding + 2-step grid),
    #             full-f32 output path for a tight numerical check. -------------
    B2 = 53
    state2 = jax.random.normal(k_state2, (B2, state_dim), jnp.float32)
    probs2, value2 = actor_critic_forward(state2, fused, a_dim,
                                          probs_dtype=jnp.float32)
    jax.block_until_ready((probs2, value2))
    ref_probs2, ref_value2 = _reference(state2, params)

    assert probs2.shape == (B2, action_dim) and value2.shape == (B2, 1)
    assert jnp.allclose(probs2, ref_probs2, atol=2e-3, rtol=2e-3)
    assert jnp.allclose(value2, ref_value2, atol=2e-3, rtol=2e-3)
    assert jnp.allclose(jnp.sum(probs2, axis=-1), 1.0, atol=2e-3)

    # TODO(synk): calculateLoss / evaluate (Categorical sampling, smooth_l1) are
    # training-time host-side utilities, not part of forward(); not kernelized.

    print("KERNEL_OK")
</pallas_src>

<mosaic_0001>
module attributes {stable_mosaic.version = 11 : i64} {
  func.func @_actor_critic_kernel(%arg0: i32, %arg1: memref<8x16xf32, #tpu.memory_space<vmem>>, %arg2: memref<16x128xf32, #tpu.memory_space<vmem>>, %arg3: memref<1x128xf32, #tpu.memory_space<vmem>>, %arg4: memref<128x128xf32, #tpu.memory_space<vmem>>, %arg5: memref<1x128xf32, #tpu.memory_space<vmem>>, %arg6: memref<8x128xbf16, #tpu.memory_space<vmem>>, %arg7: memref<8x1xf32, #tpu.memory_space<vmem>>) attributes {dimension_semantics = [#tpu.dimension_semantics<parallel>], iteration_bounds = array<i64: 1>, scalar_prefetch = 0 : i64, scratch_operands = 0 : i64, tpu.core_type = #tpu.core_type<tc>, window_params = [{transform_indices = @transform_0, window_bounds = array<i64: 8, 16>}, {pipeline_mode = #tpu.pipeline_mode<synchronous>, transform_indices = @transform_1, window_bounds = array<i64: 16, 128>}, {pipeline_mode = #tpu.pipeline_mode<synchronous>, transform_indices = @transform_2, window_bounds = array<i64: 1, 128>}, {pipeline_mode = #tpu.pipeline_mode<synchronous>, transform_indices = @transform_3, window_bounds = array<i64: 128, 128>}, {pipeline_mode = #tpu.pipeline_mode<synchronous>, transform_indices = @transform_4, window_bounds = array<i64: 1, 128>}, {transform_indices = @transform_5, window_bounds = array<i64: 8, 128>}, {transform_indices = @transform_6, window_bounds = array<i64: 8, 1>}]} {
    %c0 = arith.constant 0 : index
    %c0_0 = arith.constant 0 : index
    %0 = vector.load %arg1[%c0, %c0_0] : memref<8x16xf32, #tpu.memory_space<vmem>>, vector<8x16xf32>
    %c0_1 = arith.constant 0 : index
    %c0_2 = arith.constant 0 : index
    %1 = vector.load %arg2[%c0_1, %c0_2] : memref<16x128xf32, #tpu.memory_space<vmem>>, vector<16x128xf32>
    %cst = arith.constant dense<0.000000e+00> : vector<8x128xf32>
    %2 = tpu.matmul %0, %1, %cst {dimension_numbers = #tpu.dot_dimension_numbers<[1], [0], [0], [1], [0, 0, 1, 1], [], []>} : vector<8x16xf32>, vector<16x128xf32>, vector<8x128xf32> -> vector<8x128xf32>
    %c0_3 = arith.constant 0 : index
    %c0_4 = arith.constant 0 : index
    %3 = vector.load %arg3[%c0_3, %c0_4] : memref<1x128xf32, #tpu.memory_space<vmem>>, vector<1x128xf32>
    %4 = vector.broadcast %3 : vector<1x128xf32> to vector<8x128xf32>
    %5 = arith.addf %2, %4 : vector<8x128xf32>
    %6 = math.tanh %5 : vector<8x128xf32>
    %c0_5 = arith.constant 0 : index
    %c0_6 = arith.constant 0 : index
    %7 = vector.load %arg4[%c0_5, %c0_6] : memref<128x128xf32, #tpu.memory_space<vmem>>, vector<128x128xf32>
    %cst_7 = arith.constant dense<0.000000e+00> : vector<8x128xf32>
    %8 = tpu.matmul %6, %7, %cst_7 {dimension_numbers = #tpu.dot_dimension_numbers<[1], [0], [0], [1], [0, 0, 1, 1], [], []>} : vector<8x128xf32>, vector<128x128xf32>, vector<8x128xf32> -> vector<8x128xf32>
    %c0_8 = arith.constant 0 : index
    %c0_9 = arith.constant 0 : index
    %9 = vector.load %arg5[%c0_8, %c0_9] : memref<1x128xf32, #tpu.memory_space<vmem>>, vector<1x128xf32>
    %10 = vector.broadcast %9 : vector<1x128xf32> to vector<8x128xf32>
    %11 = arith.addf %8, %10 : vector<8x128xf32>
    %12 = tpu.iota {dimensions = array<i32: 1>} : vector<8x128xi32>
    %c8_i32 = arith.constant 8 : i32
    %13 = vector.broadcast %c8_i32 : i32 to vector<8x128xi32>
    %14 = arith.cmpi slt, %12, %13 : vector<8x128xi32>
    %cst_10 = arith.constant 0xFF800000 : f32
    %15 = vector.broadcast %cst_10 : f32 to vector<8x128xf32>
    %16 = arith.select %14, %11, %15 : vector<8x128xi1>, vector<8x128xf32>
    %cst_11 = arith.constant dense<0xFF800000> : vector<8xf32>
    %17 = vector.multi_reduction <maximumf>, %16, %cst_11 [1] : vector<8x128xf32> to vector<8xf32>
    %18 = vector.shape_cast %17 : vector<8xf32> to vector<8x1xf32>
    %19 = vector.broadcast %18 : vector<8x1xf32> to vector<8x128xf32>
    %20 = arith.subf %16, %19 : vector<8x128xf32>
    %21 = math.exp %20 : vector<8x128xf32>
    %cst_12 = arith.constant dense<0.000000e+00> : vector<8xf32>
    %22 = vector.multi_reduction <add>, %21, %cst_12 [1] : vector<8x128xf32> to vector<8xf32>
    %23 = vector.shape_cast %22 : vector<8xf32> to vector<8x1xf32>
    %24 = vector.broadcast %23 : vector<8x1xf32> to vector<8x128xf32>
    %25 = arith.divf %21, %24 : vector<8x128xf32>
    %26 = arith.truncf %25 : vector<8x128xf32> to vector<8x128xbf16>
    %c0_13 = arith.constant 0 : index
    %c0_14 = arith.constant 0 : index
    %27 = vector.load %arg6[%c0_13, %c0_14] : memref<8x128xbf16, #tpu.memory_space<vmem>>, vector<8x128xbf16>
    tpu.vector_store %arg6[%c0_13, %c0_14], %26 {strides = array<i32>} : memref<8x128xbf16, #tpu.memory_space<vmem>>, vector<8x128xbf16>,
    %c8_i32_15 = arith.constant 8 : i32
    %28 = vector.broadcast %c8_i32_15 : i32 to vector<8x128xi32>
    %29 = arith.cmpi eq, %12, %28 : vector<8x128xi32>
    %cst_16 = arith.constant 0.000000e+00 : f32
    %30 = vector.broadcast %cst_16 : f32 to vector<8x128xf32>
    %31 = arith.select %29, %11, %30 : vector<8x128xi1>, vector<8x128xf32>
    %cst_17 = arith.constant dense<0.000000e+00> : vector<8xf32>
    %32 = vector.multi_reduction <add>, %31, %cst_17 [1] : vector<8x128xf32> to vector<8xf32>
    %33 = vector.shape_cast %32 : vector<8xf32> to vector<8x1xf32>
    %c0_18 = arith.constant 0 : index
    %c0_19 = arith.constant 0 : index
    %34 = vector.load %arg7[%c0_18, %c0_19] : memref<8x1xf32, #tpu.memory_space<vmem>>, vector<8x1xf32>
    tpu.vector_store %arg7[%c0_18, %c0_19], %33 {strides = array<i32>} : memref<8x1xf32, #tpu.memory_space<vmem>>, vector<8x1xf32>,
    return
  }
  func.func @transform_0(%arg0: i32) -> (i32, i32) {
    %c0_i32 = arith.constant 0 : i32
    %c0_i32_0 = arith.constant 0 : i32
    return %arg0, %c0_i32 : i32, i32
  }
  func.func @transform_1(%arg0: i32) -> (i32, i32) {
    %c0_i32 = arith.constant 0 : i32
    %c0_i32_0 = arith.constant 0 : i32
    %c0_i32_1 = arith.constant 0 : i32
    return %c0_i32, %c0_i32_0 : i32, i32
  }
  func.func @transform_2(%arg0: i32) -> (i32, i32) {
    %c0_i32 = arith.constant 0 : i32
    %c0_i32_0 = arith.constant 0 : i32
    %c0_i32_1 = arith.constant 0 : i32
    return %c0_i32, %c0_i32_0 : i32, i32
  }
  func.func @transform_3(%arg0: i32) -> (i32, i32) {
    %c0_i32 = arith.constant 0 : i32
    %c0_i32_0 = arith.constant 0 : i32
    %c0_i32_1 = arith.constant 0 : i32
    return %c0_i32, %c0_i32_0 : i32, i32
  }
  func.func @transform_4(%arg0: i32) -> (i32, i32) {
    %c0_i32 = arith.constant 0 : i32
    %c0_i32_0 = arith.constant 0 : i32
    %c0_i32_1 = arith.constant 0 : i32
    return %c0_i32, %c0_i32_0 : i32, i32
  }
  func.func @transform_5(%arg0: i32) -> (i32, i32) {
    %c0_i32 = arith.constant 0 : i32
    %c0_i32_0 = arith.constant 0 : i32
    return %arg0, %c0_i32 : i32, i32
  }
  func.func @transform_6(%arg0: i32) -> (i32, i32) {
    %c0_i32 = arith.constant 0 : i32
    %c0_i32_0 = arith.constant 0 : i32
    return %arg0, %c0_i32 : i32, i32
  }
}

</mosaic_0001>

<llo_original>
// kernel: tpu_custom_call.1
$region0: #{tpu_custom_call.1}
  #allocation0 [shape = 'u32[]', space=smem, size = 0x4, offset = 0x4, fixed_abs, tag = 'smem constant byte address 0x4 - core index']
  #allocation1 [shape = 'u32[72,128]{1,0:T(1,128)}', space=vmem, size = 0x9000, scoped, tag = 'internal scratch']
  %s0 = inlined_call_operand.hbm [shape: f32[8,16], index: 0, kind: input, shape index: {}]
  %s1 = inlined_call_operand.hbm [shape: f32[16,128], index: 1, kind: input, shape index: {}]
  %s2 = inlined_call_operand.vmem [shape: f32[1,128], index: 2, kind: input, shape index: {}]
  %s3 = inlined_call_operand.hbm [shape: f32[128,128], index: 3, kind: input, shape index: {}]
  %s4 = inlined_call_operand.vmem [shape: f32[1,128], index: 4, kind: input, shape index: {}]
  %s5 = inlined_call_operand.hbm [shape: bf16[8,128], index: 5, kind: output, shape index: {0}]
  %s6 = inlined_call_operand.vmem [shape: f32[8,1], index: 6, kind: output, shape index: {1}]
  %7 = xla_tuple %s5, %s6
  %s8 = sld [smem:[#allocation0]]
  $region50: #{tpu_custom_call.1} parent=0
    _
  %s10 = ssub.s32 1, %s8
  %s11 = scalar_select 0, %s10, %s8
  $region1: #{tpu_custom_call.1} parent=0
    #allocation2 [shape = 'u8[4096]{0}', space=vmem, size = 0x1000, scoped, tag = 'input window, operand 0, single buffered']
    #allocation3 [shape = 's32[1]{0}', space=sflag, size = 0x4, scoped, tag = 'scoped memory for tpu_custom_call.1']
    #allocation4 [shape = 's32[1]{0}', space=sflag, size = 0x4, scoped, tag = 'scoped memory for tpu_custom_call.1']
    #allocation5 [shape = 'u8[8192]{0}', space=vmem, size = 0x2000, scoped, tag = 'input window, operand 1, single buffered']
    #allocation6 [shape = 's32[1]{0}', space=sflag, size = 0x4, scoped, tag = 'scoped memory for tpu_custom_call.1']
    #allocation7 [shape = 'u8[65536]{0}', space=vmem, size = 0x10000, scoped, tag = 'input window, operand 3, single buffered']
    #allocation8 [shape = 'u8[2048]{0}', space=vmem, size = 0x800, scoped, tag = 'output window, operand 0, single buffered']
    %12 = vsyncpa [#allocation3], 0
    %13 = vsyncpa [#allocation6], 0
    %14 = vsyncpa [#allocation4], 0
    // Predicated region
    $region2: #{tpu_custom_call.1} parent=1 // pred_check
      _
    $region3: #{tpu_custom_call.1} parent=1 // pred_check_branch
      %16 = sbr.rel (0) target = $region5
    $region4: #{tpu_custom_call.1} parent=1 // pred_region
      %18 = vsyncadd [#allocation3], 0
      %s20 = sshll.u32 %s0, 4
      %s21 = int_to_ptr.hbm [resolvable:$true] %s20
      %s22 = sshll.u32 [#allocation2], 4
      %s23 = int_to_ptr.vmem [resolvable:$true] %s22
      %25 = dma.hbm_to_vmem [thread:$0]  %s21, 128, %s23, [#allocation3]
    $region5: #{tpu_custom_call.1} parent=1 // pred_fallthru
      _
    // Predicated region
    $region6: #{tpu_custom_call.1} parent=1 // pred_check
      _
    $region7: #{tpu_custom_call.1} parent=1 // pred_check_branch
      %27 = sbr.rel (0) target = $region9
    $region8: #{tpu_custom_call.1} parent=1 // pred_region
      %29 = vsyncadd [#allocation6], 0
      %s30 = sshll.u32 %s1, 4
      %s31 = int_to_ptr.hbm [resolvable:$true] %s30
      %s32 = sshll.u32 [#allocation5], 4
      %s33 = int_to_ptr.vmem [resolvable:$true] %s32
      %38 = dma.hbm_to_vmem [thread:$0]  %s31, 256, %s33, [#allocation6], 128, 128, 8
    $region9: #{tpu_custom_call.1} parent=1 // pred_fallthru
      _
    // Predicated region
    $region10: #{tpu_custom_call.1} parent=1 // pred_check
      _
    $region11: #{tpu_custom_call.1} parent=1 // pred_check_branch
      %40 = sbr.rel (0) target = $region13
    $region12: #{tpu_custom_call.1} parent=1 // pred_region
      _
    $region13: #{tpu_custom_call.1} parent=1 // pred_fallthru
      _
    // Predicated region
    $region14: #{tpu_custom_call.1} parent=1 // pred_check
      _
    $region15: #{tpu_custom_call.1} parent=1 // pred_check_branch
      %42 = sbr.rel (0) target = $region17
    $region16: #{tpu_custom_call.1} parent=1 // pred_region
      %44 = vsyncadd [#allocation6], 0
      %s45 = sshll.u32 %s3, 4
      %s46 = int_to_ptr.hbm [resolvable:$true] %s45
      %s47 = sshll.u32 [#allocation7], 4
      %s48 = int_to_ptr.vmem [resolvable:$true] %s47
      %53 = dma.hbm_to_vmem [thread:$0]  %s46, 2048, %s48, [#allocation6], 128, 128, 8
    $region17: #{tpu_custom_call.1} parent=1 // pred_fallthru
      _
    // Predicated region
    $region18: #{tpu_custom_call.1} parent=1 // pred_check
      _
    $region19: #{tpu_custom_call.1} parent=1 // pred_check_branch
      %55 = sbr.rel (0) target = $region21
    $region20: #{tpu_custom_call.1} parent=1 // pred_region
      _
    $region21: #{tpu_custom_call.1} parent=1 // pred_fallthru
      _
    // Predicated region
    $region22: #{tpu_custom_call.1} parent=1 // pred_check
      _
    $region23: #{tpu_custom_call.1} parent=1 // pred_check_branch
      %57 = sbr.rel (0) target = $region25
    $region24: #{tpu_custom_call.1} parent=1 // pred_region
      %59 = dma.done [#allocation3], 128
    $region25: #{tpu_custom_call.1} parent=1 // pred_fallthru
      _
    // Predicated region
    $region26: #{tpu_custom_call.1} parent=1 // pred_check
      _
    $region27: #{tpu_custom_call.1} parent=1 // pred_check_branch
      %61 = sbr.rel (0) target = $region29
    $region28: #{tpu_custom_call.1} parent=1 // pred_region
      %63 = dma.done [#allocation6], 256
    $region29: #{tpu_custom_call.1} parent=1 // pred_fallthru
      _
    // Predicated region
    $region30: #{tpu_custom_call.1} parent=1 // pred_check
      _
    $region31: #{tpu_custom_call.1} parent=1 // pred_check_branch
      %65 = sbr.rel (0) target = $region33
    $region32: #{tpu_custom_call.1} parent=1 // pred_region
      %67 = dma.done [#allocation6], 2048
    $region33: #{tpu_custom_call.1} parent=1 // pred_fallthru
      _
    %v68 = vld [vmem:[#allocation2] sm:$0xff]
    %v69 = vld [vmem:[#allocation5] sm:$0xff]
    %v70 = vld [vmem:[#allocation5 + $0x8] sm:$0xff]
    %v71 = vld [vmem:[%s2] sm:$0x1]
    %v73 = vperm.slane %v71, 0
    %vm75 = vcmask 130048
    %v77 = vsel %vm75, %v68, 0
    %79 = vmatpush.msra.mxu0 0.0
    %80 = vmatpush.msra.mxu0 0.0
    %81 = vmatpush.msra.mxu0 0.0
    %82 = vmatpush.msra.mxu0 0.0
    %83 = vmatpush.msra.mxu0 0.0
    %84 = vmatpush.msra.mxu0 0.0
    %85 = vmatpush.msra.mxu0 0.0
    %86 = vmatpush.msra.mxu0 0.0
    %87 = vmatpush.msra.mxu0 0.0
    %88 = vmatpush.msra.mxu0 0.0
    %89 = vmatpush.msra.mxu0 0.0
    %90 = vmatpush.msra.mxu0 0.0
    %91 = vmatpush.msra.mxu0 0.0
    %92 = vmatpush.msra.mxu0 0.0
    %93 = vmatpush.msra.mxu0 %v70
    %94 = vmatpush.msra.mxu0 %v69
    %95 = vmatmul.f32.gmra.mxu0 %v77
    %v96 = vpop.f32.mrf.mxu0
    %v97 = vadd.f32 %v73, %v96
    %98 = vdwg.mxu0
    %v99 = vtanh.pop %v97
    %v100 = vld [vmem:[#allocation7] sm:$0xff]
    %v101 = vld [vmem:[#allocation7 + $0x8] sm:$0xff]
    %v102 = vld [vmem:[#allocation7 + $0x10] sm:$0xff]
    %v103 = vld [vmem:[#allocation7 + $0x18] sm:$0xff]
    %v104 = vld [vmem:[#allocation7 + $0x20] sm:$0xff]
    %v105 = vld [vmem:[#allocation7 + $0x28] sm:$0xff]
    %v106 = vld [vmem:[#allocation7 + $0x30] sm:$0xff]
    %v107 = vld [vmem:[#allocation7 + $0x38] sm:$0xff]
    %v108 = vld [vmem:[#allocation7 + $0x40] sm:$0xff]
    %v109 = vld [vmem:[#allocation7 + $0x48] sm:$0xff]
    %v110 = vld [vmem:[#allocation7 + $0x50] sm:$0xff]
    %v111 = vld [vmem:[#allocation7 + $0x58] sm:$0xff]
    %v112 = vld [vmem:[#allocation7 + $0x60] sm:$0xff]
    %v113 = vld [vmem:[#allocation7 + $0x68] sm:$0xff]
    %v114 = vld [vmem:[#allocation7 + $0x70] sm:$0xff]
    %v115 = vld [vmem:[#allocation7 + $0x78] sm:$0xff]
    %v116 = vld [vmem:[%s4] sm:$0x1]
    %v118 = vperm.slane %v116, 0
    %120 = vmatpush.msra.mxu0 %v115
    %121 = vmatpush.msra.mxu0 %v114
    %122 = vmatpush.msra.mxu0 %v113
    %123 = vmatpush.msra.mxu0 %v112
    %124 = vmatpush.msra.mxu0 %v111
    %125 = vmatpush.msra.mxu0 %v110
    %126 = vmatpush.msra.mxu0 %v109
    %127 = vmatpush.msra.mxu0 %v108
    %128 = vmatpush.msra.mxu0 %v107
    %129 = vmatpush.msra.mxu0 %v106
    %130 = vmatpush.msra.mxu0 %v105
    %131 = vmatpush.msra.mxu0 %v104
    %132 = vmatpush.msra.mxu0 %v103
    %133 = vmatpush.msra.mxu0 %v102
    %134 = vmatpush.msra.mxu0 %v101
    %135 = vmatpush.msra.mxu0 %v100
    %136 = vmatmul.f32.gmra.mxu0 %v99
    %v137 = vpop.f32.mrf.mxu0
    %v138 = vadd.f32 %v118, %v137
    %139 = vdwg.mxu0
    %v140 = vlaneseq
    %v141 = vand.u32 %v140, 127
    %vm142 = vcmp.lt.s32.totalorder %v141, 8
    %v143 = vsel %vm142, %v138, -inf
    %144 = vmax.xlane.f32.xlu0 %v143
    %v145 = vpop.xlane.xlu0 %144
    %v146 = vsub.f32 %v143, %v145
    %v147 = vmul.f32 %v146, 1.442695
    %v148 = vpow.pop %v147
    %149 = vadd.xlane.f32.xlu0 %v148
    %v150 = vpop.xlane.xlu0 %149
    %v151 = vrcp.pop %v150
    %v152 = vmul.f32 %v150, %v151
    %v153 = vsub.f32 1.0, %v152
    %v154 = vmul.f32 %v151, %v153
    %v155 = vadd.f32 %v151, %v154
    %vm156 = vweird.f32 %v150
    %vm157 = vweird.f32 %v151
    %vm158 = vmor %vm156, %vm157
    %v159 = vsel %vm158, %v151, %v155
    %v160 = vand.u32 2147483647, %v150
    %vm161 = vcmp.eq.f32.partialorder %v160, 8.507059e+37
    %v162 = vand.u32 %v150, 2147483648
    %v163 = vor.u32 1.1754944e-38, %v162
    %v164 = vsel %vm161, %v163, %v159
    %v165 = vmul.f32 %v148, %v164
    %v166 = vpack.c.bf16 %v165, %v165
    %167 = vst [vmem:[#allocation8] sm:$0xf] %v166
    %vm168 = vcmp.eq.s32.totalorder %v141, 8
    %v169 = vsel %vm168, %v138, 0.0
    %170 = vadd.xlane.f32.xlu0 %v169
    %v171 = vpop.xlane.xlu0 %170
    %vm172 = vcmask 7168
    %173 = vst.msk [vmem:[%s6] sm:$0xff] %vm172, %v171
    // Predicated region
    $region34: #{tpu_custom_call.1} parent=1 // pred_check
      _
    $region35: #{tpu_custom_call.1} parent=1 // pred_check_branch
      %175 = sbr.rel (0) target = $region37
    $region36: #{tpu_custom_call.1} parent=1 // pred_region
      %177 = vsyncadd [#allocation4], 0
      %s179 = sshll.u32 [#allocation8], 4
      %s180 = int_to_ptr.vmem [resolvable:$true] %s179
      %s181 = sshll.u32 %s5, 4
      %s182 = int_to_ptr.hbm [resolvable:$true] %s181
      %184 = dma.vmem_to_hbm [thread:$0]  %s180, 64, %s182, [#allocation4]
    $region37: #{tpu_custom_call.1} parent=1 // pred_fallthru
      _
    // Predicated region
    $region38: #{tpu_custom_call.1} parent=1 // pred_check
      _
    $region39: #{tpu_custom_call.1} parent=1 // pred_check_branch
      %186 = sbr.rel (0) target = $region41
    $region40: #{tpu_custom_call.1} parent=1 // pred_region
      _
    $region41: #{tpu_custom_call.1} parent=1 // pred_fallthru
      _
    // Predicated region
    $region42: #{tpu_custom_call.1} parent=1 // pred_check
      _
    $region43: #{tpu_custom_call.1} parent=1 // pred_check_branch
      %188 = sbr.rel (0) target = $region45
    $region44: #{tpu_custom_call.1} parent=1 // pred_region
      %190 = dma.done [#allocation4], 64
    $region45: #{tpu_custom_call.1} parent=1 // pred_fallthru
      _
    // Predicated region
    $region46: #{tpu_custom_call.1} parent=1 // pred_check
      _
    $region47: #{tpu_custom_call.1} parent=1 // pred_check_branch
      %192 = sbr.rel (0) target = $region49
    $region48: #{tpu_custom_call.1} parent=1 // pred_region
      _
    $region49: #{tpu_custom_call.1} parent=1 // pred_fallthru
      _
    %193 = vsyncpa [#allocation3], 1
    %194 = vsyncpa [#allocation6], 1
    %195 = vsyncpa [#allocation4], 1

</llo_original>
